<compile_context>
chip_gen: v7x
topology: tpu7x:2x2x1
jax: 0.10.0
libtpu: 0.0.40
codegen_flags: <defaults>
</compile_context>

<pallas_src>
import functools

import jax
import jax.numpy as jnp
from jax.experimental import pallas as pl
from jax.experimental.pallas import tpu as pltpu


def _note_encoder_kernel(terms_ref, cnts_ref, tab_ref, out_ref, rows, *, TB, L, D, Dp):
    # terms_ref : [B, L]      int32 in SMEM (scalar prefetch) — full array
    # cnts_ref  : [TB, L, 1]  f32 in VMEM (batch tile)
    # tab_ref   : [V, Dp]     f32 fused table, resident in VMEM (embeds 0:D, weight at D)
    # out_ref   : [TB, Dp]    f32 lane-dense padded output slab
    # rows      : [TB*L, Dp]  f32 VMEM scratch for the gathered rows
    base = pl.program_id(0) * TB

    # 1) Row gather directly from the VMEM-resident table (no HBM DMAs).
    #    Each read is a dynamic-sublane [1, Dp] vector load indexed by an SMEM scalar.
    for b in range(TB):
        for l in range(L):
            idx = terms_ref[base + b, l]
            rows[pl.ds(b * L + l, 1), :] = tab_ref[pl.ds(idx, 1), :]

    gathered = rows[...].reshape(TB, L, Dp)            # [TB, L, Dp] f32

    # 2) token_weights = weights(terms) + log(cnts)   (weight lives in column D)
    #    NOTE: the [TB, L, 1] layout is lane-degenerate; accepted knowingly at this
    #    toy size.  For production L, keep L on the lane axis for this stage.
    w_tok = gathered[:, :, D:D + 1]                    # [TB, L, 1]
    tok_w = w_tok + jnp.log(cnts_ref[...])             # [TB, L, 1]

    # 3) Softmax over the sequence axis: shifted numerator only; normalize once
    #    after the weighted sum.
    m = jnp.max(tok_w, axis=1, keepdims=True)          # [TB, 1, 1]
    e = jnp.exp(tok_w - m)                             # [TB, L, 1]
    denom = jnp.sum(e, axis=1, keepdims=True)          # [TB, 1, 1]

    # 4) Weighted sum over L, then one normalization of the [TB, Dp] slab.
    #    Pad columns of the table are zero; the weight column (col D) is sliced
    #    off outside the kernel.
    #    TODO(synk): for non-toy L (>=128), contract over L on the MXU instead:
    #    jnp.einsum('bl,bld->bd', e[..., 0], gathered, preferred_element_type=jnp.float32)
    acc = jnp.sum(e * gathered, axis=1)                # [TB, Dp]
    inv = pl.reciprocal(denom, approx=True)            # EUP slot; approx=False for exact
    out_ref[...] = acc * jnp.reshape(inv, (TB, 1))


def note_encoder(terms, cnts, weights_table, embed_table):
    B, L = terms.shape
    V, D = embed_table.shape
    Dp = pl.cdiv(D + 1, 128) * 128                     # lane-dense padded row width

    # Fuse the scalar-weight column into the embedding table and zero-pad rows
    # to a multiple of 128 lanes (lane-dense gathered rows + output slab).
    fused = jnp.concatenate(
        [embed_table.astype(jnp.float32),
         weights_table.reshape(V, 1).astype(jnp.float32)],
        axis=1)
    fused = jnp.pad(fused, ((0, 0), (0, Dp - (D + 1))))

    # VMEM-residency cutoff: 20 MiB leaves headroom on v7x (64 MiB physical,
    # 32 MiB scoped default) and fits the raised scoped limit on v5e/v6e.
    table_bytes = V * Dp * 4
    assert table_bytes <= 20 * 1024 * 1024, (
        "TODO(synk): large-V fallback — HBM row gather (memory_space=pl.ANY + "
        "make_async_copy) with deduped token ids and a bounded in-flight DMA window")

    # Batch tile: whole batch at toy size (single grid step).  For non-toy B use
    # a multiple of 8 so the "parallel" axis shards across v7x's 2 TensorCores.
    TB = B
    grid = (pl.cdiv(B, TB),)

    kernel = functools.partial(_note_encoder_kernel, TB=TB, L=L, D=D, Dp=Dp)

    out_padded = pl.pallas_call(
        kernel,
        out_shape=jax.ShapeDtypeStruct((B, Dp), jnp.float32),
        grid_spec=pltpu.PrefetchScalarGridSpec(
            num_scalar_prefetch=1,                               # terms -> SMEM
            grid=grid,
            in_specs=[
                pl.BlockSpec((TB, L, 1), lambda i, terms: (i, 0, 0)),  # cnts tile
                pl.BlockSpec((V, Dp), lambda i, terms: (0, 0)),        # fused table, VMEM resident
            ],
            out_specs=pl.BlockSpec((TB, Dp), lambda i, terms: (i, 0)),
            scratch_shapes=[
                pltpu.VMEM((TB * L, Dp), jnp.float32),           # gathered rows
            ],
        ),
        compiler_params=pltpu.CompilerParams(
            dimension_semantics=("parallel",),
            vmem_limit_bytes=32 * 1024 * 1024,
        ),
    )(
        terms.astype(jnp.int32),
        cnts.astype(jnp.float32).reshape(B, L, 1),
        fused,
    )
    return out_padded[:, :D]


def reference(terms, cnts, weights_table, embed_table):
    tok_w = weights_table[terms, 0] + jnp.log(cnts.astype(jnp.float32))
    nw = jax.nn.softmax(tok_w, axis=1)
    tokens = embed_table[terms]
    return jnp.sum(nw[:, :, None] * tokens, axis=1)


if __name__ == "__main__":
    B, L, V, D = 2, 8, 32, 16   # batch, seq len, vocab, embed dim

    key = jax.random.PRNGKey(0)
    k_terms, k_cnts, k_embed, k_w = jax.random.split(key, 4)

    # Inputs: token ids and positive counts.
    terms = jax.random.randint(k_terms, (B, L), 0, V, dtype=jnp.int32)
    cnts = jax.random.randint(k_cnts, (B, L), 1, 6).astype(jnp.float32)

    # Parameters (deterministic, in-script).
    # note_token_embeds: nn.Embedding(V, D), default N(0, 1) init.
    embed_table = jax.random.normal(k_embed, (V, D), dtype=jnp.float32)
    # weights: nn.Embedding(V, 1) with xavier_normal_ init: std = sqrt(2/(V+1)).
    xavier_std = (2.0 / (V + 1)) ** 0.5
    weights_table = xavier_std * jax.random.normal(k_w, (V, 1), dtype=jnp.float32)

    out = note_encoder(terms, cnts, weights_table, embed_table)
    out = jax.block_until_ready(out)

    ref = reference(terms, cnts, weights_table, embed_table)
    assert out.shape == (B, D)
    # Tolerance loosened for pl.reciprocal(approx=True); approx=False matches to <=1e-5.
    assert jnp.allclose(out, ref, atol=1e-2, rtol=1e-2), "mismatch vs reference"

    print("KERNEL_OK")
</pallas_src>

<mosaic_0001>
module attributes {stable_mosaic.version = 11 : i64} {
  func.func @_note_encoder_kernel(%arg0: i32, %arg1: memref<2x8xi32, #tpu.memory_space<smem>>, %arg2: memref<2x8x1xf32, #tpu.memory_space<vmem>>, %arg3: memref<32x128xf32, #tpu.memory_space<vmem>>, %arg4: memref<2x128xf32, #tpu.memory_space<vmem>>, %arg5: memref<16x128xf32, #tpu.memory_space<vmem>>) attributes {dimension_semantics = [#tpu.dimension_semantics<parallel>], iteration_bounds = array<i64: 1>, scalar_prefetch = 1 : i64, scratch_operands = 1 : i64, tpu.core_type = #tpu.core_type<tc>, window_params = [{transform_indices = @transform_0, window_bounds = array<i64: 2, 8, 1>}, {pipeline_mode = #tpu.pipeline_mode<synchronous>, transform_indices = @transform_1, window_bounds = array<i64: 32, 128>}, {transform_indices = @transform_2, window_bounds = array<i64: 2, 128>}]} {
    %c2_i32 = arith.constant 2 : i32
    %0 = arith.muli %arg0, %c2_i32 : i32
    %c0_i32 = arith.constant 0 : i32
    %1 = arith.addi %0, %c0_i32 : i32
    %2 = arith.index_cast %1 : i32 to index
    %c0 = arith.constant 0 : index
    %3 = memref.load %arg1[%2, %c0] : memref<2x8xi32, #tpu.memory_space<smem>>
    %4 = arith.index_cast %3 : i32 to index
    %c0_0 = arith.constant 0 : index
    %5 = vector.load %arg3[%4, %c0_0] : memref<32x128xf32, #tpu.memory_space<vmem>>, vector<1x128xf32>
    %c0_1 = arith.constant 0 : index
    %c0_2 = arith.constant 0 : index
    %6 = vector.load %arg5[%c0_1, %c0_2] : memref<16x128xf32, #tpu.memory_space<vmem>>, vector<1x128xf32>
    tpu.vector_store %arg5[%c0_1, %c0_2], %5 {strides = array<i32>} : memref<16x128xf32, #tpu.memory_space<vmem>>, vector<1x128xf32>,
    %c0_i32_3 = arith.constant 0 : i32
    %7 = arith.addi %0, %c0_i32_3 : i32
    %8 = arith.index_cast %7 : i32 to index
    %c1 = arith.constant 1 : index
    %9 = memref.load %arg1[%8, %c1] : memref<2x8xi32, #tpu.memory_space<smem>>
    %10 = arith.index_cast %9 : i32 to index
    %c0_4 = arith.constant 0 : index
    %11 = vector.load %arg3[%10, %c0_4] : memref<32x128xf32, #tpu.memory_space<vmem>>, vector<1x128xf32>
    %c1_5 = arith.constant 1 : index
    %c0_6 = arith.constant 0 : index
    %12 = vector.load %arg5[%c1_5, %c0_6] : memref<16x128xf32, #tpu.memory_space<vmem>>, vector<1x128xf32>
    tpu.vector_store %arg5[%c1_5, %c0_6], %11 {strides = array<i32>} : memref<16x128xf32, #tpu.memory_space<vmem>>, vector<1x128xf32>,
    %c0_i32_7 = arith.constant 0 : i32
    %13 = arith.addi %0, %c0_i32_7 : i32
    %14 = arith.index_cast %13 : i32 to index
    %c2 = arith.constant 2 : index
    %15 = memref.load %arg1[%14, %c2] : memref<2x8xi32, #tpu.memory_space<smem>>
    %16 = arith.index_cast %15 : i32 to index
    %c0_8 = arith.constant 0 : index
    %17 = vector.load %arg3[%16, %c0_8] : memref<32x128xf32, #tpu.memory_space<vmem>>, vector<1x128xf32>
    %c2_9 = arith.constant 2 : index
    %c0_10 = arith.constant 0 : index
    %18 = vector.load %arg5[%c2_9, %c0_10] : memref<16x128xf32, #tpu.memory_space<vmem>>, vector<1x128xf32>
    tpu.vector_store %arg5[%c2_9, %c0_10], %17 {strides = array<i32>} : memref<16x128xf32, #tpu.memory_space<vmem>>, vector<1x128xf32>,
    %c0_i32_11 = arith.constant 0 : i32
    %19 = arith.addi %0, %c0_i32_11 : i32
    %20 = arith.index_cast %19 : i32 to index
    %c3 = arith.constant 3 : index
    %21 = memref.load %arg1[%20, %c3] : memref<2x8xi32, #tpu.memory_space<smem>>
    %22 = arith.index_cast %21 : i32 to index
    %c0_12 = arith.constant 0 : index
    %23 = vector.load %arg3[%22, %c0_12] : memref<32x128xf32, #tpu.memory_space<vmem>>, vector<1x128xf32>
    %c3_13 = arith.constant 3 : index
    %c0_14 = arith.constant 0 : index
    %24 = vector.load %arg5[%c3_13, %c0_14] : memref<16x128xf32, #tpu.memory_space<vmem>>, vector<1x128xf32>
    tpu.vector_store %arg5[%c3_13, %c0_14], %23 {strides = array<i32>} : memref<16x128xf32, #tpu.memory_space<vmem>>, vector<1x128xf32>,
    %c0_i32_15 = arith.constant 0 : i32
    %25 = arith.addi %0, %c0_i32_15 : i32
    %26 = arith.index_cast %25 : i32 to index
    %c4 = arith.constant 4 : index
    %27 = memref.load %arg1[%26, %c4] : memref<2x8xi32, #tpu.memory_space<smem>>
    %28 = arith.index_cast %27 : i32 to index
    %c0_16 = arith.constant 0 : index
    %29 = vector.load %arg3[%28, %c0_16] : memref<32x128xf32, #tpu.memory_space<vmem>>, vector<1x128xf32>
    %c4_17 = arith.constant 4 : index
    %c0_18 = arith.constant 0 : index
    %30 = vector.load %arg5[%c4_17, %c0_18] : memref<16x128xf32, #tpu.memory_space<vmem>>, vector<1x128xf32>
    tpu.vector_store %arg5[%c4_17, %c0_18], %29 {strides = array<i32>} : memref<16x128xf32, #tpu.memory_space<vmem>>, vector<1x128xf32>,
    %c0_i32_19 = arith.constant 0 : i32
    %31 = arith.addi %0, %c0_i32_19 : i32
    %32 = arith.index_cast %31 : i32 to index
    %c5 = arith.constant 5 : index
    %33 = memref.load %arg1[%32, %c5] : memref<2x8xi32, #tpu.memory_space<smem>>
    %34 = arith.index_cast %33 : i32 to index
    %c0_20 = arith.constant 0 : index
    %35 = vector.load %arg3[%34, %c0_20] : memref<32x128xf32, #tpu.memory_space<vmem>>, vector<1x128xf32>
    %c5_21 = arith.constant 5 : index
    %c0_22 = arith.constant 0 : index
    %36 = vector.load %arg5[%c5_21, %c0_22] : memref<16x128xf32, #tpu.memory_space<vmem>>, vector<1x128xf32>
    tpu.vector_store %arg5[%c5_21, %c0_22], %35 {strides = array<i32>} : memref<16x128xf32, #tpu.memory_space<vmem>>, vector<1x128xf32>,
    %c0_i32_23 = arith.constant 0 : i32
    %37 = arith.addi %0, %c0_i32_23 : i32
    %38 = arith.index_cast %37 : i32 to index
    %c6 = arith.constant 6 : index
    %39 = memref.load %arg1[%38, %c6] : memref<2x8xi32, #tpu.memory_space<smem>>
    %40 = arith.index_cast %39 : i32 to index
    %c0_24 = arith.constant 0 : index
    %41 = vector.load %arg3[%40, %c0_24] : memref<32x128xf32, #tpu.memory_space<vmem>>, vector<1x128xf32>
    %c6_25 = arith.constant 6 : index
    %c0_26 = arith.constant 0 : index
    %42 = vector.load %arg5[%c6_25, %c0_26] : memref<16x128xf32, #tpu.memory_space<vmem>>, vector<1x128xf32>
    tpu.vector_store %arg5[%c6_25, %c0_26], %41 {strides = array<i32>} : memref<16x128xf32, #tpu.memory_space<vmem>>, vector<1x128xf32>,
    %c0_i32_27 = arith.constant 0 : i32
    %43 = arith.addi %0, %c0_i32_27 : i32
    %44 = arith.index_cast %43 : i32 to index
    %c7 = arith.constant 7 : index
    %45 = memref.load %arg1[%44, %c7] : memref<2x8xi32, #tpu.memory_space<smem>>
    %46 = arith.index_cast %45 : i32 to index
    %c0_28 = arith.constant 0 : index
    %47 = vector.load %arg3[%46, %c0_28] : memref<32x128xf32, #tpu.memory_space<vmem>>, vector<1x128xf32>
    %c7_29 = arith.constant 7 : index
    %c0_30 = arith.constant 0 : index
    %48 = vector.load %arg5[%c7_29, %c0_30] : memref<16x128xf32, #tpu.memory_space<vmem>>, vector<1x128xf32>
    tpu.vector_store %arg5[%c7_29, %c0_30], %47 {strides = array<i32>} : memref<16x128xf32, #tpu.memory_space<vmem>>, vector<1x128xf32>,
    %c1_i32 = arith.constant 1 : i32
    %49 = arith.addi %0, %c1_i32 : i32
    %50 = arith.index_cast %49 : i32 to index
    %c0_31 = arith.constant 0 : index
    %51 = memref.load %arg1[%50, %c0_31] : memref<2x8xi32, #tpu.memory_space<smem>>
    %52 = arith.index_cast %51 : i32 to index
    %c0_32 = arith.constant 0 : index
    %53 = vector.load %arg3[%52, %c0_32] : memref<32x128xf32, #tpu.memory_space<vmem>>, vector<1x128xf32>
    %c8 = arith.constant 8 : index
    %c0_33 = arith.constant 0 : index
    %54 = vector.load %arg5[%c8, %c0_33] : memref<16x128xf32, #tpu.memory_space<vmem>>, vector<1x128xf32>
    tpu.vector_store %arg5[%c8, %c0_33], %53 {strides = array<i32>} : memref<16x128xf32, #tpu.memory_space<vmem>>, vector<1x128xf32>,
    %c1_i32_34 = arith.constant 1 : i32
    %55 = arith.addi %0, %c1_i32_34 : i32
    %56 = arith.index_cast %55 : i32 to index
    %c1_35 = arith.constant 1 : index
    %57 = memref.load %arg1[%56, %c1_35] : memref<2x8xi32, #tpu.memory_space<smem>>
    %58 = arith.index_cast %57 : i32 to index
    %c0_36 = arith.constant 0 : index
    %59 = vector.load %arg3[%58, %c0_36] : memref<32x128xf32, #tpu.memory_space<vmem>>, vector<1x128xf32>
    %c9 = arith.constant 9 : index
    %c0_37 = arith.constant 0 : index
    %60 = vector.load %arg5[%c9, %c0_37] : memref<16x128xf32, #tpu.memory_space<vmem>>, vector<1x128xf32>
    tpu.vector_store %arg5[%c9, %c0_37], %59 {strides = array<i32>} : memref<16x128xf32, #tpu.memory_space<vmem>>, vector<1x128xf32>,
    %c1_i32_38 = arith.constant 1 : i32
    %61 = arith.addi %0, %c1_i32_38 : i32
    %62 = arith.index_cast %61 : i32 to index
    %c2_39 = arith.constant 2 : index
    %63 = memref.load %arg1[%62, %c2_39] : memref<2x8xi32, #tpu.memory_space<smem>>
    %64 = arith.index_cast %63 : i32 to index
    %c0_40 = arith.constant 0 : index
    %65 = vector.load %arg3[%64, %c0_40] : memref<32x128xf32, #tpu.memory_space<vmem>>, vector<1x128xf32>
    %c10 = arith.constant 10 : index
    %c0_41 = arith.constant 0 : index
    %66 = vector.load %arg5[%c10, %c0_41] : memref<16x128xf32, #tpu.memory_space<vmem>>, vector<1x128xf32>
    tpu.vector_store %arg5[%c10, %c0_41], %65 {strides = array<i32>} : memref<16x128xf32, #tpu.memory_space<vmem>>, vector<1x128xf32>,
    %c1_i32_42 = arith.constant 1 : i32
    %67 = arith.addi %0, %c1_i32_42 : i32
    %68 = arith.index_cast %67 : i32 to index
    %c3_43 = arith.constant 3 : index
    %69 = memref.load %arg1[%68, %c3_43] : memref<2x8xi32, #tpu.memory_space<smem>>
    %70 = arith.index_cast %69 : i32 to index
    %c0_44 = arith.constant 0 : index
    %71 = vector.load %arg3[%70, %c0_44] : memref<32x128xf32, #tpu.memory_space<vmem>>, vector<1x128xf32>
    %c11 = arith.constant 11 : index
    %c0_45 = arith.constant 0 : index
    %72 = vector.load %arg5[%c11, %c0_45] : memref<16x128xf32, #tpu.memory_space<vmem>>, vector<1x128xf32>
    tpu.vector_store %arg5[%c11, %c0_45], %71 {strides = array<i32>} : memref<16x128xf32, #tpu.memory_space<vmem>>, vector<1x128xf32>,
    %c1_i32_46 = arith.constant 1 : i32
    %73 = arith.addi %0, %c1_i32_46 : i32
    %74 = arith.index_cast %73 : i32 to index
    %c4_47 = arith.constant 4 : index
    %75 = memref.load %arg1[%74, %c4_47] : memref<2x8xi32, #tpu.memory_space<smem>>
    %76 = arith.index_cast %75 : i32 to index
    %c0_48 = arith.constant 0 : index
    %77 = vector.load %arg3[%76, %c0_48] : memref<32x128xf32, #tpu.memory_space<vmem>>, vector<1x128xf32>
    %c12 = arith.constant 12 : index
    %c0_49 = arith.constant 0 : index
    %78 = vector.load %arg5[%c12, %c0_49] : memref<16x128xf32, #tpu.memory_space<vmem>>, vector<1x128xf32>
    tpu.vector_store %arg5[%c12, %c0_49], %77 {strides = array<i32>} : memref<16x128xf32, #tpu.memory_space<vmem>>, vector<1x128xf32>,
    %c1_i32_50 = arith.constant 1 : i32
    %79 = arith.addi %0, %c1_i32_50 : i32
    %80 = arith.index_cast %79 : i32 to index
    %c5_51 = arith.constant 5 : index
    %81 = memref.load %arg1[%80, %c5_51] : memref<2x8xi32, #tpu.memory_space<smem>>
    %82 = arith.index_cast %81 : i32 to index
    %c0_52 = arith.constant 0 : index
    %83 = vector.load %arg3[%82, %c0_52] : memref<32x128xf32, #tpu.memory_space<vmem>>, vector<1x128xf32>
    %c13 = arith.constant 13 : index
    %c0_53 = arith.constant 0 : index
    %84 = vector.load %arg5[%c13, %c0_53] : memref<16x128xf32, #tpu.memory_space<vmem>>, vector<1x128xf32>
    tpu.vector_store %arg5[%c13, %c0_53], %83 {strides = array<i32>} : memref<16x128xf32, #tpu.memory_space<vmem>>, vector<1x128xf32>,
    %c1_i32_54 = arith.constant 1 : i32
    %85 = arith.addi %0, %c1_i32_54 : i32
    %86 = arith.index_cast %85 : i32 to index
    %c6_55 = arith.constant 6 : index
    %87 = memref.load %arg1[%86, %c6_55] : memref<2x8xi32, #tpu.memory_space<smem>>
    %88 = arith.index_cast %87 : i32 to index
    %c0_56 = arith.constant 0 : index
    %89 = vector.load %arg3[%88, %c0_56] : memref<32x128xf32, #tpu.memory_space<vmem>>, vector<1x128xf32>
    %c14 = arith.constant 14 : index
    %c0_57 = arith.constant 0 : index
    %90 = vector.load %arg5[%c14, %c0_57] : memref<16x128xf32, #tpu.memory_space<vmem>>, vector<1x128xf32>
    tpu.vector_store %arg5[%c14, %c0_57], %89 {strides = array<i32>} : memref<16x128xf32, #tpu.memory_space<vmem>>, vector<1x128xf32>,
    %c1_i32_58 = arith.constant 1 : i32
    %91 = arith.addi %0, %c1_i32_58 : i32
    %92 = arith.index_cast %91 : i32 to index
    %c7_59 = arith.constant 7 : index
    %93 = memref.load %arg1[%92, %c7_59] : memref<2x8xi32, #tpu.memory_space<smem>>
    %94 = arith.index_cast %93 : i32 to index
    %c0_60 = arith.constant 0 : index
    %95 = vector.load %arg3[%94, %c0_60] : memref<32x128xf32, #tpu.memory_space<vmem>>, vector<1x128xf32>
    %c15 = arith.constant 15 : index
    %c0_61 = arith.constant 0 : index
    %96 = vector.load %arg5[%c15, %c0_61] : memref<16x128xf32, #tpu.memory_space<vmem>>, vector<1x128xf32>
    tpu.vector_store %arg5[%c15, %c0_61], %95 {strides = array<i32>} : memref<16x128xf32, #tpu.memory_space<vmem>>, vector<1x128xf32>,
    %c0_62 = arith.constant 0 : index
    %c0_63 = arith.constant 0 : index
    %97 = vector.load %arg5[%c0_62, %c0_63] : memref<16x128xf32, #tpu.memory_space<vmem>>, vector<16x128xf32>
    %98 = vector.shape_cast %97 : vector<16x128xf32> to vector<2x8x128xf32>
    %99 = vector.extract_strided_slice %98 {offsets = [0, 0, 16], sizes = [2, 8, 1], strides = [1, 1, 1]} : vector<2x8x128xf32> to vector<2x8x1xf32>
    %c0_64 = arith.constant 0 : index
    %c0_65 = arith.constant 0 : index
    %c0_66 = arith.constant 0 : index
    %100 = vector.load %arg2[%c0_64, %c0_65, %c0_66] : memref<2x8x1xf32, #tpu.memory_space<vmem>>, vector<2x8x1xf32>
    %101 = math.log %100 : vector<2x8x1xf32>
    %102 = arith.addf %99, %101 : vector<2x8x1xf32>
    %cst = arith.constant dense<0xFF800000> : vector<2x1xf32>
    %103 = vector.multi_reduction <maximumf>, %102, %cst [1] : vector<2x8x1xf32> to vector<2x1xf32>
    %104 = vector.shape_cast %103 : vector<2x1xf32> to vector<2x1x1xf32>
    %105 = vector.broadcast %104 : vector<2x1x1xf32> to vector<2x8x1xf32>
    %106 = arith.subf %102, %105 : vector<2x8x1xf32>
    %107 = math.exp %106 : vector<2x8x1xf32>
    %cst_67 = arith.constant dense<0.000000e+00> : vector<2x1xf32>
    %108 = vector.multi_reduction <add>, %107, %cst_67 [1] : vector<2x8x1xf32> to vector<2x1xf32>
    %109 = vector.shape_cast %108 : vector<2x1xf32> to vector<2x1x1xf32>
    %110 = vector.broadcast %107 : vector<2x8x1xf32> to vector<2x8x128xf32>
    %111 = arith.mulf %110, %98 : vector<2x8x128xf32>
    %cst_68 = arith.constant dense<0.000000e+00> : vector<2x128xf32>
    %112 = vector.multi_reduction <add>, %111, %cst_68 [1] : vector<2x8x128xf32> to vector<2x128xf32>
    %113 = tpu.reciprocal %109 {approx = true} : vector<2x1x1xf32> -> vector<2x1x1xf32>
    %114 = vector.shape_cast %113 : vector<2x1x1xf32> to vector<2x1xf32>
    %115 = vector.broadcast %114 : vector<2x1xf32> to vector<2x128xf32>
    %116 = arith.mulf %112, %115 : vector<2x128xf32>
    %c0_69 = arith.constant 0 : index
    %c0_70 = arith.constant 0 : index
    %117 = vector.load %arg4[%c0_69, %c0_70] : memref<2x128xf32, #tpu.memory_space<vmem>>, vector<2x128xf32>
    tpu.vector_store %arg4[%c0_69, %c0_70], %116 {strides = array<i32>} : memref<2x128xf32, #tpu.memory_space<vmem>>, vector<2x128xf32>,
    return
  }
  func.func @transform_0(%arg0: i32, %arg1: memref<2x8xi32, #tpu.memory_space<smem>>) -> (i32, i32, i32) {
    %c0_i32 = arith.constant 0 : i32
    %c0_i32_0 = arith.constant 0 : i32
    %c0_i32_1 = arith.constant 0 : i32
    return %arg0, %c0_i32, %c0_i32_0 : i32, i32, i32
  }
  func.func @transform_1(%arg0: i32, %arg1: memref<2x8xi32, #tpu.memory_space<smem>>) -> (i32, i32) {
    %c0_i32 = arith.constant 0 : i32
    %c0_i32_0 = arith.constant 0 : i32
    %c0_i32_1 = arith.constant 0 : i32
    return %c0_i32, %c0_i32_0 : i32, i32
  }
  func.func @transform_2(%arg0: i32, %arg1: memref<2x8xi32, #tpu.memory_space<smem>>) -> (i32, i32) {
    %c0_i32 = arith.constant 0 : i32
    %c0_i32_0 = arith.constant 0 : i32
    return %arg0, %c0_i32 : i32, i32
  }
}

</mosaic_0001>

<llo_original>
// kernel: tpu_custom_call.1
$region0: #{tpu_custom_call.1}
  #allocation0 [shape = 'u32[]', space=smem, size = 0x4, offset = 0x4, fixed_abs, tag = 'smem constant byte address 0x4 - core index']
  #allocation1 [shape = 'u32[144,128]{1,0:T(1,128)}', space=vmem, size = 0x12000, scoped, tag = 'internal scratch']
  #allocation2 [shape = 'f32[16,128]{1,0:T(8,128)}', space=vmem, size = 0x2000, scoped, tag = 'scratch operand']
  #allocation3 [shape = 's32[1]{0}', space=sflag, size = 0x4, scoped, tag = 'scoped memory for tpu_custom_call.1']
  #allocation4 [shape = 'u8[1024]{0}', space=smem, size = 0x400, scoped, tag = 'prefetched SMEM operand 0']
  %s0 = inlined_call_operand.vmem [shape: s32[2,8], index: 0, kind: input, shape index: {}]
  %s1 = inlined_call_operand.vmem [shape: f32[2,8,1], index: 1, kind: input, shape index: {}]
  %s2 = inlined_call_operand.hbm [shape: f32[32,128], index: 2, kind: input, shape index: {}]
  %s3 = inlined_call_operand.hbm [shape: f32[2,128], index: 3, kind: output, shape index: {}]
  %s4 = sld [smem:[#allocation0]]
  $region22: #{tpu_custom_call.1} parent=0
    _
  %s6 = ssub.s32 1, %s4
  %s7 = scalar_select 0, %s6, %s4
  %s8 = sshll.u32 %s0, 4
  %s9 = int_to_ptr.vmem [resolvable:$true] %s8
  %11 = dma.vmem_to_smem %s9, 32, [#allocation4], [#allocation3]
  %12 = dma.done [#allocation3], 32
  %13 = sfence
  $region1: #{tpu_custom_call.1} parent=0
    #allocation5 [shape = 'u8[16384]{0}', space=vmem, size = 0x4000, scoped, tag = 'input window, operand 2, single buffered']
    #allocation6 [shape = 's32[1]{0}', space=sflag, size = 0x4, scoped, tag = 'scoped memory for tpu_custom_call.1']
    #allocation7 [shape = 's32[1]{0}', space=sflag, size = 0x4, scoped, tag = 'scoped memory for tpu_custom_call.1']
    #allocation8 [shape = 'u8[1024]{0}', space=vmem, size = 0x400, scoped, tag = 'output window, operand 0, single buffered']
    %14 = vsyncpa [#allocation6], 0
    %15 = vsyncpa [#allocation7], 0
    // Predicated region
    $region2: #{tpu_custom_call.1} parent=1 // pred_check
      _
    $region3: #{tpu_custom_call.1} parent=1 // pred_check_branch
      %17 = sbr.rel (0) target = $region5
    $region4: #{tpu_custom_call.1} parent=1 // pred_region
      _
    $region5: #{tpu_custom_call.1} parent=1 // pred_fallthru
      _
    // Predicated region
    $region6: #{tpu_custom_call.1} parent=1 // pred_check
      _
    $region7: #{tpu_custom_call.1} parent=1 // pred_check_branch
      %19 = sbr.rel (0) target = $region9
    $region8: #{tpu_custom_call.1} parent=1 // pred_region
      %s21 = ssub.s32 512, 512
      %22 = vsyncadd [#allocation6], %s21
      %s23 = sshll.u32 [#allocation5], 4
      %s24 = int_to_ptr.vmem [resolvable:$true] %s23
      %29 = dma.hbm_to_vmem [thread:$0]  %s2, 512, %s24, [#allocation6], 128, 128, 8
    $region9: #{tpu_custom_call.1} parent=1 // pred_fallthru
      _
    // Predicated region
    $region10: #{tpu_custom_call.1} parent=1 // pred_check
      _
    $region11: #{tpu_custom_call.1} parent=1 // pred_check_branch
      %31 = sbr.rel (0) target = $region13
    $region12: #{tpu_custom_call.1} parent=1 // pred_region
      %32 = dma.done [#allocation6], 512
    $region13: #{tpu_custom_call.1} parent=1 // pred_fallthru
      _
    %s33 = smul.u32 0, 2
    %s34 = smul.u32 %s33, 128
    %s35 = sld [smem:[#allocation4 + %s34]]
    %s36 = scalar_lea.vmem [#allocation5], %s35
    %v37 = vld [vmem:[%s36] sm:$0x1]
    %38 = vst [vmem:[#allocation2] sm:$0x1] %v37
    %s39 = sadd.s32 %s34, 1
    %s40 = sld [smem:[#allocation4 + %s39]]
    %s41 = scalar_lea.vmem [#allocation5], %s40
    %v42 = vld [vmem:[%s41] sm:$0x1]
    %43 = vst [vmem:[#allocation2 + $0x1] sm:$0x1] %v42
    %s44 = sadd.s32 %s34, 2
    %s45 = sld [smem:[#allocation4 + %s44]]
    %s46 = scalar_lea.vmem [#allocation5], %s45
    %v47 = vld [vmem:[%s46] sm:$0x1]
    %48 = vst [vmem:[#allocation2 + $0x2] sm:$0x1] %v47
    %s49 = sadd.s32 %s34, 3
    %s50 = sld [smem:[#allocation4 + %s49]]
    %s51 = scalar_lea.vmem [#allocation5], %s50
    %v52 = vld [vmem:[%s51] sm:$0x1]
    %53 = vst [vmem:[#allocation2 + $0x3] sm:$0x1] %v52
    %s54 = sadd.s32 %s34, 4
    %s55 = sld [smem:[#allocation4 + %s54]]
    %s56 = scalar_lea.vmem [#allocation5], %s55
    %v57 = vld [vmem:[%s56] sm:$0x1]
    %58 = vst [vmem:[#allocation2 + $0x4] sm:$0x1] %v57
    %s59 = sadd.s32 %s34, 5
    %s60 = sld [smem:[#allocation4 + %s59]]
    %s61 = scalar_lea.vmem [#allocation5], %s60
    %v62 = vld [vmem:[%s61] sm:$0x1]
    %63 = vst [vmem:[#allocation2 + $0x5] sm:$0x1] %v62
    %s64 = sadd.s32 %s34, 6
    %s65 = sld [smem:[#allocation4 + %s64]]
    %s66 = scalar_lea.vmem [#allocation5], %s65
    %v67 = vld [vmem:[%s66] sm:$0x1]
    %68 = vst [vmem:[#allocation2 + $0x6] sm:$0x1] %v67
    %s69 = sadd.s32 %s34, 7
    %s70 = sld [smem:[#allocation4 + %s69]]
    %s71 = scalar_lea.vmem [#allocation5], %s70
    %v72 = vld [vmem:[%s71] sm:$0x1]
    %73 = vst [vmem:[#allocation2 + $0x7] sm:$0x1] %v72
    %s74 = sadd.s32 %s33, 1
    %s75 = smul.u32 %s74, 128
    %s76 = sld [smem:[#allocation4 + %s75]]
    %s77 = scalar_lea.vmem [#allocation5], %s76
    %v78 = vld [vmem:[%s77] sm:$0x1]
    %79 = vst [vmem:[#allocation2 + $0x8] sm:$0x1] %v78
    %s80 = sadd.s32 %s75, 1
    %s81 = sld [smem:[#allocation4 + %s80]]
    %s82 = scalar_lea.vmem [#allocation5], %s81
    %v83 = vld [vmem:[%s82] sm:$0x1]
    %84 = vst [vmem:[#allocation2 + $0x9] sm:$0x1] %v83
    %s85 = sadd.s32 %s75, 2
    %s86 = sld [smem:[#allocation4 + %s85]]
    %s87 = scalar_lea.vmem [#allocation5], %s86
    %v88 = vld [vmem:[%s87] sm:$0x1]
    %89 = vst [vmem:[#allocation2 + $0xa] sm:$0x1] %v88
    %s90 = sadd.s32 %s75, 3
    %s91 = sld [smem:[#allocation4 + %s90]]
    %s92 = scalar_lea.vmem [#allocation5], %s91
    %v93 = vld [vmem:[%s92] sm:$0x1]
    %94 = vst [vmem:[#allocation2 + $0xb] sm:$0x1] %v93
    %s95 = sadd.s32 %s75, 4
    %s96 = sld [smem:[#allocation4 + %s95]]
    %s97 = scalar_lea.vmem [#allocation5], %s96
    %v98 = vld [vmem:[%s97] sm:$0x1]
    %99 = vst [vmem:[#allocation2 + $0xc] sm:$0x1] %v98
    %s100 = sadd.s32 %s75, 5
    %s101 = sld [smem:[#allocation4 + %s100]]
    %s102 = scalar_lea.vmem [#allocation5], %s101
    %v103 = vld [vmem:[%s102] sm:$0x1]
    %104 = vst [vmem:[#allocation2 + $0xd] sm:$0x1] %v103
    %s105 = sadd.s32 %s75, 6
    %s106 = sld [smem:[#allocation4 + %s105]]
    %s107 = scalar_lea.vmem [#allocation5], %s106
    %v108 = vld [vmem:[%s107] sm:$0x1]
    %109 = vst [vmem:[#allocation2 + $0xe] sm:$0x1] %v108
    %s110 = sadd.s32 %s75, 7
    %s111 = sld [smem:[#allocation4 + %s110]]
    %s112 = scalar_lea.vmem [#allocation5], %s111
    %v113 = vld [vmem:[%s112] sm:$0x1]
    %114 = vst [vmem:[#allocation2 + $0xf] sm:$0x1] %v113
    %v115 = vld [vmem:[#allocation2] sm:$0xff]
    %v116 = vld [vmem:[#allocation2 + $0x8] sm:$0xff]
    %v117 = vld [vmem:[%s1] sm:$0xff]
    %v118 = vld [vmem:[%s1 + $0x8] sm:$0xff]
    %v119 = vlog2.pop %v117
    %v120 = vmul.f32 %v119, 0.6931472
    %v121 = vlog2.pop %v118
    %v122 = vmul.f32 %v121, 0.6931472
    %125 = vrot.lane.b32.xlu0 %v120, 16
    %v126 = vpop.permute.xlu0 %125
    %127 = vrot.lane.b32.xlu0 %v122, 16
    %v128 = vpop.permute.xlu0 %127
    %v131 = vadd.f32 %v115, %v126
    %v132 = vadd.f32 %v116, %v128
    %vm133 = vcmask 138368
    %v134 = vsel %vm133, %v131, -inf
    %v135 = vrot.slane %v134, 4
    %v136 = vmax.f32 %v134, %v135
    %v137 = vrot.slane %v136, 2
    %v138 = vmax.f32 %v136, %v137
    %v139 = vrot.slane %v138, 1
    %v140 = vmax.f32 %v138, %v139
    %v141 = vsel %vm133, %v132, -inf
    %v142 = vrot.slane %v141, 4
    %v143 = vmax.f32 %v141, %v142
    %v144 = vrot.slane %v143, 2
    %v145 = vmax.f32 %v143, %v144
    %v146 = vrot.slane %v145, 1
    %v147 = vmax.f32 %v145, %v146
    %v148 = vsub.f32 %v131, %v140
    %v149 = vsub.f32 %v132, %v147
    %v150 = vmul.f32 %v148, 1.442695
    %v151 = vpow.pop %v150
    %v152 = vmul.f32 %v149, 1.442695
    %v153 = vpow.pop %v152
    %v154 = vsel %vm133, %v151, 0.0
    %v155 = vrot.slane %v154, 4
    %v156 = vadd.f32 %v154, %v155
    %v157 = vrot.slane %v156, 2
    %v158 = vadd.f32 %v156, %v157
    %v159 = vrot.slane %v158, 1
    %v160 = vadd.f32 %v158, %v159
    %v161 = vsel %vm133, %v153, 0.0
    %v162 = vrot.slane %v161, 4
    %v163 = vadd.f32 %v161, %v162
    %v164 = vrot.slane %v163, 2
    %v165 = vadd.f32 %v163, %v164
    %v166 = vrot.slane %v165, 1
    %v167 = vadd.f32 %v165, %v166
    %169 = vset.pattern.permute.xlu0 16
    %170 = vperm.xlu0 %169, %v151
    %v171 = vpop.permute.xlu0 %170
    %174 = vset.pattern.permute.xlu0 16
    %175 = vperm.xlu0 %174, %v153
    %v176 = vpop.permute.xlu0 %175
    %v178 = vmul.f32 %v171, %v115
    %v179 = vmul.f32 %v176, %v116
    %v180 = vrot.slane %v178, 4
    %v181 = vadd.f32 %v178, %v180
    %v182 = vrot.slane %v181, 2
    %v183 = vadd.f32 %v181, %v182
    %v184 = vrot.slane %v183, 1
    %v185 = vadd.f32 %v183, %v184
    %v186 = vrot.slane %v179, 4
    %v187 = vadd.f32 %v179, %v186
    %v188 = vrot.slane %v187, 2
    %v189 = vadd.f32 %v187, %v188
    %v190 = vrot.slane %v189, 1
    %v191 = vadd.f32 %v189, %v190
    %v192 = vrcp.pop %v160
    %v193 = vrcp.pop %v167
    %195 = vset.pattern.permute.xlu0 16
    %196 = vperm.xlu0 %195, %v192
    %v197 = vpop.permute.xlu0 %196
    %200 = vset.pattern.permute.xlu0 16
    %201 = vperm.xlu0 %200, %v193
    %v202 = vpop.permute.xlu0 %201
    %v204 = vmul.f32 %v185, %v197
    %v205 = vmul.f32 %v191, %v202
    %vm208 = vcmask 1041409
    %v209 = vsel %vm208, %v205, %v204
    %211 = vst [vmem:[#allocation8] sm:$0x3] %v209
    // Predicated region
    $region14: #{tpu_custom_call.1} parent=1 // pred_check
      _
    $region15: #{tpu_custom_call.1} parent=1 // pred_check_branch
      %213 = sbr.rel (0) target = $region17
    $region16: #{tpu_custom_call.1} parent=1 // pred_region
      %s215 = ssub.s32 32, 32
      %216 = vsyncadd [#allocation7], %s215
      %s218 = sshll.u32 [#allocation8], 4
      %s219 = int_to_ptr.vmem [resolvable:$true] %s218
      %221 = dma.vmem_to_hbm [thread:$0]  %s219, 32, %s3, [#allocation7]
    $region17: #{tpu_custom_call.1} parent=1 // pred_fallthru
      _
    // Predicated region
    $region18: #{tpu_custom_call.1} parent=1 // pred_check
      _
    $region19: #{tpu_custom_call.1} parent=1 // pred_check_branch
      %223 = sbr.rel (0) target = $region21
    $region20: #{tpu_custom_call.1} parent=1 // pred_region
      %224 = dma.done [#allocation7], 32
    $region21: #{tpu_custom_call.1} parent=1 // pred_fallthru
      _
    %225 = vsyncpa [#allocation6], 1
    %226 = vsyncpa [#allocation7], 1

</llo_original>
